<compile_context>
chip_gen: v7x
topology: tpu7x:2x2x1
jax: 0.10.0
libtpu: 0.0.40
codegen_flags: <defaults>
</compile_context>

<pallas_src>
import functools

import jax
import jax.numpy as jnp
from jax import lax
from jax.experimental import pallas as pl
from jax.experimental.pallas import tpu as pltpu


def _round_up(x, m):
    return (x + m - 1) // m * m


def _dipoles_block_kernel(l0_ref, w1_ref, b1_ref, w2t_ref, b2_ref,
                          post_ref, mT_ref, chq_ref, acc_ref, *, n_out):
    """One atom block: 2-layer MLP -> raw charges (atoms on lanes), plus one
    MXU-native fused per-molecule reduction into this core's accumulator.

    acc rows (W = 4*n_out + 3):
      [0:n_out]        sum_i q_raw[i, k]
      [n_out:4*n_out]  sum_i q_raw[i, k] * pos[i, j]   (k-major, j fast)
      [4*n_out:]       sum_i pos[i, j]
    """
    b = pl.program_id(1)

    @pl.when(b == 0)
    def _():
        acc_ref[...] = jnp.zeros_like(acc_ref)

    # ---- layer 1: (bn, n_in) @ (n_in, H), f32 accumulation on the MXU ----
    h = jnp.dot(l0_ref[...], w1_ref[...], preferred_element_type=jnp.float32)
    h = h + b1_ref[...]
    h = h * jax.nn.sigmoid(h)                                   # silu, f32 VPU/EUP

    # ---- layer 2 with atoms on the lane axis: (n_out, H) x (bn, H)^T ----
    charges_t = lax.dot_general(
        w2t_ref[...], h, dimension_numbers=(((1,), (1,)), ((), ())),
        preferred_element_type=jnp.float32) + b2_ref[...]       # (n_out, bn)
    chq_ref[...] = charges_t                                    # lane-dense store

    # ---- fused per-molecule reduction payload (rows = W, lanes = atoms) ----
    pos_t = post_ref[...]                                       # (3, bn) f32
    bn = charges_t.shape[1]
    if n_out == 1:
        z_rows = charges_t * pos_t                              # (3, bn)
    else:
        z_rows = (charges_t[:, None, :] * pos_t[None, :, :]).reshape(3 * n_out, bn)
    payload_t = jnp.concatenate([charges_t, z_rows, pos_t], axis=0)   # (W, bn)

    # One MXU-native matmul contracting the atom axis; kept in f32 (M is exact 0/1).
    mT = mT_ref[...].astype(jnp.float32)                        # bf16 -> f32, VPU
    red = lax.dot_general(payload_t, mT,
                          dimension_numbers=(((1,), (0,)), ((), ())),
                          preferred_element_type=jnp.float32)   # (W, maxm)
    acc_ref[...] += red[None, :, :]


@functools.partial(jax.jit, static_argnames=("block_n", "matmul_dtype",
                                              "core_splits", "input_buffer_count"))
def dipoles_forward(l0, positions, idx_m, natoms, total_charge,
                    w1, b1, w2, b2, *, block_n=1024,
                    matmul_dtype=jnp.float32, core_splits=2,
                    input_buffer_count=2):
    """Returns (dipoles (maxm*n_out, 3), charges (N, n_out)) as in Dipoles.forward."""
    N, n_in = l0.shape
    H = w1.shape[1]
    n_out = w2.shape[1]
    maxm = natoms.shape[0]
    W = 4 * n_out + 3
    itemsize = jnp.dtype(matmul_dtype).itemsize

    # ---- atom-block size: lane axis of charge/pos blocks => multiple of 128;
    #      cap so the double-buffered streamed set stays under ~20 MiB (v7x safe).
    vmem_budget = 20 * 1024 * 1024
    per_row = 2 * (n_in * itemsize + 3 * 4 + maxm * 2 + n_out * 4)
    cap = max(128, (vmem_budget // per_row) // 128 * 128)
    bn = max(128, min(block_n, cap, _round_up(pl.cdiv(N, core_splits), 128)))
    bn = _round_up(bn, 128)
    n_pad = _round_up(N, core_splits * bn)
    pad = n_pad - N
    bpc = n_pad // (core_splits * bn)                  # atom blocks per core slice

    # ---- operand prep (all casts hoisted out of the kernel) ----
    l0_p = jnp.pad(l0, ((0, pad), (0, 0))).astype(matmul_dtype)
    pos_t = jnp.pad(positions, ((0, pad), (0, 0))).astype(jnp.float32).T   # (3, n_pad)
    # padded atoms get molecule id == maxm -> all-zero one-hot row -> no contribution
    idx_p = jnp.pad(idx_m.astype(jnp.int32), (0, pad), constant_values=maxm)
    # bf16 one-hot membership (exact 0/1) halves HBM traffic vs f32.
    # TODO(synk): for very large N, sort atoms by molecule and use scalar-prefetched
    # per-molecule offsets (PrefetchScalarGridSpec) so the dense (N, maxm) M never exists.
    mT = (idx_p[:, None] == jnp.arange(maxm, dtype=jnp.int32)[None, :]
          ).astype(jnp.bfloat16)                                           # (n_pad, maxm)

    w1_c = w1.astype(matmul_dtype)
    b1_2d = b1.reshape(1, H).astype(jnp.float32)
    w2t = w2.astype(jnp.float32).T.reshape(n_out, H)       # layer 2 stays f32
    b2_col = b2.reshape(n_out, 1).astype(jnp.float32)

    def stream_spec(shape, imap):
        # Optional deeper buffering for low-BW chips (v5e) if DMA waits are exposed.
        if input_buffer_count != 2:
            return pl.BlockSpec(shape, imap, pipeline_mode=pl.Buffered(input_buffer_count))
        return pl.BlockSpec(shape, imap)

    flops = (2 * n_pad * n_in * H + 2 * n_pad * H * n_out
             + 2 * n_pad * W * maxm + 8 * n_pad * n_out)
    bytes_accessed = (n_pad * n_in * itemsize + n_pad * 3 * 4 + n_pad * maxm * 2
                      + n_pad * n_out * 4 + n_in * H * itemsize + H * 4
                      + n_out * H * 4 + n_out * 4 + core_splits * W * maxm * 4)

    chraw_t, acc_parts = pl.pallas_call(
        functools.partial(_dipoles_block_kernel, n_out=n_out),
        out_shape=(
            jax.ShapeDtypeStruct((n_out, n_pad), jnp.float32),       # raw charges^T
            jax.ShapeDtypeStruct((core_splits, W, maxm), jnp.float32),  # partial acc
        ),
        grid_spec=pltpu.PrefetchScalarGridSpec(
            num_scalar_prefetch=0,
            grid=(core_splits, bpc),
            in_specs=[
                stream_spec((bn, n_in), lambda c, b: (c * bpc + b, 0)),   # l0
                pl.BlockSpec((n_in, H), lambda c, b: (0, 0)),             # w1
                pl.BlockSpec((1, H), lambda c, b: (0, 0)),                # b1
                pl.BlockSpec((n_out, H), lambda c, b: (0, 0)),            # w2^T
                pl.BlockSpec((n_out, 1), lambda c, b: (0, 0)),            # b2
                pl.BlockSpec((3, bn), lambda c, b: (0, c * bpc + b)),     # pos^T
                stream_spec((bn, maxm), lambda c, b: (c * bpc + b, 0)),   # one-hot M^T
            ],
            out_specs=[
                pl.BlockSpec((n_out, bn), lambda c, b: (0, c * bpc + b)),
                pl.BlockSpec((1, W, maxm), lambda c, b: (c, 0, 0)),
            ],
        ),
        # outer axis: per-core split (v7x megacore); inner axis carries the
        # per-core accumulator -> "arbitrary".
        compiler_params=pltpu.CompilerParams(
            dimension_semantics=("parallel", "arbitrary"),
            vmem_limit_bytes=32 * 1024 * 1024),
        cost_estimate=pl.CostEstimate(flops=flops, transcendentals=n_pad * H,
                                      bytes_accessed=bytes_accessed),
    )(l0_p, w1_c, b1_2d, w2t, b2_col, pos_t, mT)

    # ---- finalize in plain XLA (tiny: maxm rows + one N-row gather/add) ----
    acc = jnp.sum(acc_parts, axis=0).T                       # (maxm, W)
    sum_q = acc[:, :n_out]                                   # (maxm, n_out)
    dip_raw = acc[:, n_out:4 * n_out].reshape(maxm, n_out, 3)
    pos_sum = acc[:, 4 * n_out:]                             # (maxm, 3)

    natoms_safe = jnp.maximum(natoms, 1).astype(jnp.float32)  # guard empty slots
    corr = (total_charge.reshape(maxm, 1).astype(jnp.float32) - sum_q) \
        / natoms_safe[:, None]                               # (maxm, n_out)

    # dip[m,k,:] = sum_i q_raw[i,k]*pos[i,:] + corr[m,k] * sum_i pos[i,:]
    dipoles = (dip_raw + corr[:, :, None] * pos_sum[:, None, :]).reshape(maxm * n_out, 3)
    charges = chraw_t[:, :N].T + corr[idx_m]                 # gather + add (XLA)
    return dipoles, charges


def _reference(l0, positions, idx_m, natoms, total_charge, w1, b1, w2, b2):
    """Pure-JAX reference mirroring the PyTorch forward."""
    h = l0 @ w1 + b1
    h = h * jax.nn.sigmoid(h)
    charges = h @ w2 + b2
    maxm = natoms.shape[0]
    sum_charge = jax.ops.segment_sum(charges, idx_m, num_segments=maxm)
    corr = (total_charge[:, None] - sum_charge) / natoms[:, None].astype(jnp.float32)
    charges = charges + corr[idx_m]
    y = jnp.einsum('ij,ik->ijk', positions, charges)        # (N, 3, n_out)
    y = jax.ops.segment_sum(y, idx_m, num_segments=maxm)    # (maxm, 3, n_out)
    y = jnp.transpose(y, (0, 2, 1)).reshape(-1, 3)
    return y, charges


if __name__ == "__main__":
    key = jax.random.PRNGKey(0)
    k1, k2, k3, k4, k5, k6, k7, k8 = jax.random.split(key, 8)

    # sizes: 300 atoms, 3 molecules, n_in = n_hidden = 32
    n_in, n_hidden = 32, 32
    counts = [120, 100, 80]
    N = sum(counts)
    natoms = jnp.array(counts, dtype=jnp.int32)
    maxm = natoms.shape[0]
    idx_m = jnp.concatenate([jnp.full((c,), m, jnp.int32) for m, c in enumerate(counts)])
    total_charge = jnp.array([0.0, 1.0, -1.0], dtype=jnp.float32)

    l0 = jax.random.normal(k1, (N, n_in), dtype=jnp.float32)
    positions = jax.random.normal(k2, (N, 3), dtype=jnp.float32)

    # build_mlp(n_layers=2): n_in -> H -> n_out
    w1 = jax.random.normal(k3, (n_in, n_hidden), jnp.float32) / jnp.sqrt(n_in)
    b1 = jax.random.normal(k4, (n_hidden,), jnp.float32) * 0.01
    w2 = jax.random.normal(k5, (n_hidden, 1), jnp.float32) / jnp.sqrt(n_hidden)
    b2 = jax.random.normal(k6, (1,), jnp.float32) * 0.01

    dip_ref, chg_ref = _reference(l0, positions, idx_m, natoms, total_charge,
                                  w1, b1, w2, b2)

    # f32 path, small blocks -> grid (2, 2): exercises core split + accumulation.
    dipoles, charges = dipoles_forward(
        l0, positions, idx_m, natoms, total_charge, w1, b1, w2, b2,
        block_n=128, matmul_dtype=jnp.float32, core_splits=2)
    jax.block_until_ready((dipoles, charges))
    assert dipoles.shape == (maxm * 1, 3)
    assert charges.shape == (N, 1)
    assert jnp.allclose(dipoles, dip_ref, atol=1e-3, rtol=1e-4)
    assert jnp.allclose(charges, chg_ref, atol=1e-3, rtol=1e-4)

    # n_out = 2 path (general payload construction), default block size.
    w2b = jax.random.normal(k7, (n_hidden, 2), jnp.float32) / jnp.sqrt(n_hidden)
    b2b = jax.random.normal(k8, (2,), jnp.float32) * 0.01
    dip_ref2, chg_ref2 = _reference(l0, positions, idx_m, natoms, total_charge,
                                    w1, b1, w2b, b2b)
    dip2, chg2 = dipoles_forward(
        l0, positions, idx_m, natoms, total_charge, w1, b1, w2b, b2b,
        matmul_dtype=jnp.float32, core_splits=2)
    jax.block_until_ready((dip2, chg2))
    assert dip2.shape == (maxm * 2, 3)
    assert chg2.shape == (N, 2)
    assert jnp.allclose(dip2, dip_ref2, atol=1e-3, rtol=1e-4)
    assert jnp.allclose(chg2, chg_ref2, atol=1e-3, rtol=1e-4)

    # bf16 layer-1 operands (f32 accumulation; reduction and positions stay f32).
    dip_bf16, chg_bf16 = dipoles_forward(
        l0, positions, idx_m, natoms, total_charge, w1, b1, w2, b2,
        block_n=128, matmul_dtype=jnp.bfloat16, core_splits=2)
    jax.block_until_ready((dip_bf16, chg_bf16))
    assert jnp.allclose(dip_bf16, dip_ref, atol=2e-1, rtol=5e-2)
    assert jnp.allclose(chg_bf16, chg_ref, atol=5e-2, rtol=5e-2)

    print("KERNEL_OK")
</pallas_src>

<mosaic_0001>
module attributes {stable_mosaic.version = 11 : i64} {
  func.func @_dipoles_block_kernel(%arg0: i32, %arg1: i32, %arg2: memref<128x32xf32, #tpu.memory_space<vmem>>, %arg3: memref<32x32xf32, #tpu.memory_space<vmem>>, %arg4: memref<1x32xf32, #tpu.memory_space<vmem>>, %arg5: memref<1x32xf32, #tpu.memory_space<vmem>>, %arg6: memref<1x1xf32, #tpu.memory_space<vmem>>, %arg7: memref<3x128xf32, #tpu.memory_space<vmem>>, %arg8: memref<128x3xbf16, #tpu.memory_space<vmem>>, %arg9: memref<1x128xf32, #tpu.memory_space<vmem>>, %arg10: memref<1x7x3xf32, #tpu.memory_space<vmem>>) attributes {dimension_semantics = [#tpu.dimension_semantics<parallel>, #tpu.dimension_semantics<arbitrary>], iteration_bounds = array<i64: 2, 2>, scalar_prefetch = 0 : i64, scratch_operands = 0 : i64, tpu.core_type = #tpu.core_type<tc>, window_params = [{transform_indices = @transform_0, window_bounds = array<i64: 128, 32>}, {pipeline_mode = #tpu.pipeline_mode<synchronous>, transform_indices = @transform_1, window_bounds = array<i64: 32, 32>}, {pipeline_mode = #tpu.pipeline_mode<synchronous>, transform_indices = @transform_2, window_bounds = array<i64: 1, 32>}, {pipeline_mode = #tpu.pipeline_mode<synchronous>, transform_indices = @transform_3, window_bounds = array<i64: 1, 32>}, {pipeline_mode = #tpu.pipeline_mode<synchronous>, transform_indices = @transform_4, window_bounds = array<i64: 1, 1>}, {transform_indices = @transform_5, window_bounds = array<i64: 3, 128>}, {transform_indices = @transform_6, window_bounds = array<i64: 128, 3>}, {transform_indices = @transform_7, window_bounds = array<i64: 1, 128>}, {transform_indices = @transform_8, window_bounds = array<i64: 1, 7, 3>}]} {
    %c0_i32 = arith.constant 0 : i32
    %0 = arith.cmpi eq, %arg1, %c0_i32 : i32
    %1 = arith.extui %0 : i1 to i32
    %c0_i32_0 = arith.constant 0 : i32
    %2 = arith.cmpi ne, %1, %c0_i32_0 : i32
    scf.if %2 {
      %cst_25 = arith.constant 0.000000e+00 : f32
      %32 = vector.broadcast %cst_25 : f32 to vector<1x7x3xf32>
      %c0_26 = arith.constant 0 : index
      %c0_27 = arith.constant 0 : index
      %c0_28 = arith.constant 0 : index
      %33 = vector.load %arg10[%c0_26, %c0_27, %c0_28] : memref<1x7x3xf32, #tpu.memory_space<vmem>>, vector<1x7x3xf32>
      tpu.vector_store %arg10[%c0_26, %c0_27, %c0_28], %32 {strides = array<i32>} : memref<1x7x3xf32, #tpu.memory_space<vmem>>, vector<1x7x3xf32>,
    } else {
    }
    %c0 = arith.constant 0 : index
    %c0_1 = arith.constant 0 : index
    %3 = vector.load %arg2[%c0, %c0_1] : memref<128x32xf32, #tpu.memory_space<vmem>>, vector<128x32xf32>
    %c0_2 = arith.constant 0 : index
    %c0_3 = arith.constant 0 : index
    %4 = vector.load %arg3[%c0_2, %c0_3] : memref<32x32xf32, #tpu.memory_space<vmem>>, vector<32x32xf32>
    %cst = arith.constant dense<0.000000e+00> : vector<128x32xf32>
    %5 = tpu.matmul %3, %4, %cst {dimension_numbers = #tpu.dot_dimension_numbers<[1], [0], [0], [1], [0, 0, 1, 1], [], []>} : vector<128x32xf32>, vector<32x32xf32>, vector<128x32xf32> -> vector<128x32xf32>
    %c0_4 = arith.constant 0 : index
    %c0_5 = arith.constant 0 : index
    %6 = vector.load %arg4[%c0_4, %c0_5] : memref<1x32xf32, #tpu.memory_space<vmem>>, vector<1x32xf32>
    %7 = vector.broadcast %6 : vector<1x32xf32> to vector<128x32xf32>
    %8 = arith.addf %5, %7 : vector<128x32xf32>
    %9 = arith.negf %8 : vector<128x32xf32>
    %10 = math.exp %9 : vector<128x32xf32>
    %cst_6 = arith.constant 1.000000e+00 : f32
    %11 = vector.broadcast %cst_6 : f32 to vector<128x32xf32>
    %12 = arith.addf %11, %10 : vector<128x32xf32>
    %13 = arith.divf %11, %12 : vector<128x32xf32>
    %14 = arith.mulf %8, %13 : vector<128x32xf32>
    %c0_7 = arith.constant 0 : index
    %c0_8 = arith.constant 0 : index
    %15 = vector.load %arg5[%c0_7, %c0_8] : memref<1x32xf32, #tpu.memory_space<vmem>>, vector<1x32xf32>
    %cst_9 = arith.constant dense<0.000000e+00> : vector<1x128xf32>
    %16 = tpu.matmul %15, %14, %cst_9 {dimension_numbers = #tpu.dot_dimension_numbers<[1], [1], [0], [0], [0, 0, 1, 0], [], []>} : vector<1x32xf32>, vector<128x32xf32>, vector<1x128xf32> -> vector<1x128xf32>
    %c0_10 = arith.constant 0 : index
    %c0_11 = arith.constant 0 : index
    %17 = vector.load %arg6[%c0_10, %c0_11] : memref<1x1xf32, #tpu.memory_space<vmem>>, vector<1x1xf32>
    %18 = vector.broadcast %17 : vector<1x1xf32> to vector<1x128xf32>
    %19 = arith.addf %16, %18 : vector<1x128xf32>
    %c0_12 = arith.constant 0 : index
    %c0_13 = arith.constant 0 : index
    %20 = vector.load %arg9[%c0_12, %c0_13] : memref<1x128xf32, #tpu.memory_space<vmem>>, vector<1x128xf32>
    tpu.vector_store %arg9[%c0_12, %c0_13], %19 {strides = array<i32>} : memref<1x128xf32, #tpu.memory_space<vmem>>, vector<1x128xf32>,
    %c0_14 = arith.constant 0 : index
    %c0_15 = arith.constant 0 : index
    %21 = vector.load %arg7[%c0_14, %c0_15] : memref<3x128xf32, #tpu.memory_space<vmem>>, vector<3x128xf32>
    %22 = vector.broadcast %19 : vector<1x128xf32> to vector<3x128xf32>
    %23 = arith.mulf %22, %21 : vector<3x128xf32>
    %24 = tpu.concatenate %19, %23, %21 in 0 : vector<1x128xf32>, vector<3x128xf32>, vector<3x128xf32> -> vector<7x128xf32>
    %c0_16 = arith.constant 0 : index
    %c0_17 = arith.constant 0 : index
    %25 = vector.load %arg8[%c0_16, %c0_17] : memref<128x3xbf16, #tpu.memory_space<vmem>>, vector<128x3xbf16>
    %26 = arith.extf %25 : vector<128x3xbf16> to vector<128x3xf32>
    %cst_18 = arith.constant dense<0.000000e+00> : vector<7x3xf32>
    %27 = tpu.matmul %24, %26, %cst_18 {dimension_numbers = #tpu.dot_dimension_numbers<[1], [0], [0], [1], [0, 0, 1, 1], [], []>} : vector<7x128xf32>, vector<128x3xf32>, vector<7x3xf32> -> vector<7x3xf32>
    %c0_19 = arith.constant 0 : index
    %c0_20 = arith.constant 0 : index
    %c0_21 = arith.constant 0 : index
    %28 = vector.load %arg10[%c0_19, %c0_20, %c0_21] : memref<1x7x3xf32, #tpu.memory_space<vmem>>, vector<1x7x3xf32>
    %29 = vector.shape_cast %27 : vector<7x3xf32> to vector<1x7x3xf32>
    %30 = arith.addf %28, %29 : vector<1x7x3xf32>
    %c0_22 = arith.constant 0 : index
    %c0_23 = arith.constant 0 : index
    %c0_24 = arith.constant 0 : index
    %31 = vector.load %arg10[%c0_22, %c0_23, %c0_24] : memref<1x7x3xf32, #tpu.memory_space<vmem>>, vector<1x7x3xf32>
    tpu.vector_store %arg10[%c0_22, %c0_23, %c0_24], %30 {strides = array<i32>} : memref<1x7x3xf32, #tpu.memory_space<vmem>>, vector<1x7x3xf32>,
    return
  }
  func.func @transform_0(%arg0: i32, %arg1: i32) -> (i32, i32) {
    %c2_i32 = arith.constant 2 : i32
    %0 = arith.muli %arg0, %c2_i32 : i32
    %1 = arith.addi %0, %arg1 : i32
    %c0_i32 = arith.constant 0 : i32
    %c0_i32_0 = arith.constant 0 : i32
    return %1, %c0_i32 : i32, i32
  }
  func.func @transform_1(%arg0: i32, %arg1: i32) -> (i32, i32) {
    %c0_i32 = arith.constant 0 : i32
    %c0_i32_0 = arith.constant 0 : i32
    %c0_i32_1 = arith.constant 0 : i32
    return %c0_i32, %c0_i32_0 : i32, i32
  }
  func.func @transform_2(%arg0: i32, %arg1: i32) -> (i32, i32) {
    %c0_i32 = arith.constant 0 : i32
    %c0_i32_0 = arith.constant 0 : i32
    %c0_i32_1 = arith.constant 0 : i32
    return %c0_i32, %c0_i32_0 : i32, i32
  }
  func.func @transform_3(%arg0: i32, %arg1: i32) -> (i32, i32) {
    %c0_i32 = arith.constant 0 : i32
    %c0_i32_0 = arith.constant 0 : i32
    %c0_i32_1 = arith.constant 0 : i32
    return %c0_i32, %c0_i32_0 : i32, i32
  }
  func.func @transform_4(%arg0: i32, %arg1: i32) -> (i32, i32) {
    %c0_i32 = arith.constant 0 : i32
    %c0_i32_0 = arith.constant 0 : i32
    %c0_i32_1 = arith.constant 0 : i32
    return %c0_i32, %c0_i32_0 : i32, i32
  }
  func.func @transform_5(%arg0: i32, %arg1: i32) -> (i32, i32) {
    %c2_i32 = arith.constant 2 : i32
    %0 = arith.muli %arg0, %c2_i32 : i32
    %1 = arith.addi %0, %arg1 : i32
    %c0_i32 = arith.constant 0 : i32
    %c0_i32_0 = arith.constant 0 : i32
    return %c0_i32, %1 : i32, i32
  }
  func.func @transform_6(%arg0: i32, %arg1: i32) -> (i32, i32) {
    %c2_i32 = arith.constant 2 : i32
    %0 = arith.muli %arg0, %c2_i32 : i32
    %1 = arith.addi %0, %arg1 : i32
    %c0_i32 = arith.constant 0 : i32
    %c0_i32_0 = arith.constant 0 : i32
    return %1, %c0_i32 : i32, i32
  }
  func.func @transform_7(%arg0: i32, %arg1: i32) -> (i32, i32) {
    %c2_i32 = arith.constant 2 : i32
    %0 = arith.muli %arg0, %c2_i32 : i32
    %1 = arith.addi %0, %arg1 : i32
    %c0_i32 = arith.constant 0 : i32
    %c0_i32_0 = arith.constant 0 : i32
    return %c0_i32, %1 : i32, i32
  }
  func.func @transform_8(%arg0: i32, %arg1: i32) -> (i32, i32, i32) {
    %c0_i32 = arith.constant 0 : i32
    %c0_i32_0 = arith.constant 0 : i32
    %c0_i32_1 = arith.constant 0 : i32
    return %arg0, %c0_i32, %c0_i32_0 : i32, i32, i32
  }
}

</mosaic_0001>

<llo_original>
// kernel: dipoles_forward.1
$region0: #{dipoles_forward.1}
  #allocation0 [shape = 'u32[]', space=smem, size = 0x4, offset = 0x4, fixed_abs, tag = 'smem constant byte address 0x4 - core index']
  #allocation1 [shape = 'u32[144,128]{1,0:T(1,128)}', space=vmem, size = 0x12000, scoped, tag = 'internal scratch']
  #allocation2 [shape = 'f32[1,1]{1,0:T(1,128)S(1)}', space=vmem, size = 0x200, scoped, tag = 'scoped memory for dipoles_forward.1']
  %s0 = inlined_call_operand.vmem [shape: f32[512,32], index: 0, kind: input, shape index: {}]
  %s1 = inlined_call_operand.vmem [shape: f32[32,32], index: 1, kind: input, shape index: {}]
  %s2 = inlined_call_operand.vmem [shape: f32[1,32], index: 2, kind: input, shape index: {}]
  %s3 = inlined_call_operand.vmem [shape: f32[1,32], index: 3, kind: input, shape index: {}]
  %s4 = inlined_call_operand.<no memory space> [shape: f32[1,1], index: 4, kind: input, shape index: {}]
  %s5 = inlined_call_operand.vmem [shape: f32[3,512], index: 5, kind: input, shape index: {}]
  %s6 = inlined_call_operand.vmem [shape: bf16[512,3], index: 6, kind: input, shape index: {}]
  %s7 = inlined_call_operand.vmem [shape: f32[1,512], index: 7, kind: output, shape index: {0}]
  %s8 = inlined_call_operand.vmem [shape: f32[2,7,3], index: 8, kind: output, shape index: {1}]
  %9 = xla_tuple %s7, %s8
  %s10 = sld [smem:[#allocation0]]
  $region73: #{dipoles_forward.1} parent=0
    _
  %s12 = ssub.s32 1, %s10
  %s13 = scalar_select 0, %s12, %s10
  %v14 = vstv %s4
  %15 = vst [vmem:[#allocation2] sm:$0x1] %v14
  loop: start=0, step=1, limit=6
  $region2: #{dipoles_forward.1} parent=0 // loop_pre_header
    _
  $region3: #{dipoles_forward.1} parent=0 // loop_header
    %s17 = sphi 0, %s21
    %p18 = scmp.ge.s32.totalorder %s17, 6
    %s24 = sphi 0, %s36
    %s25 = sphi 0, %s32
    %s26 = sphi 0, %s24
    %s27 = sphi 0, %s25
    %s28 = sphi 0, %s26
    %s29 = sphi 0, %s27
    %s43 = sphi 0, %s45
    %s46 = sphi 0, %s43
    %s47 = sphi 0, %s46
    %s63 = sphi 0, %s47
    %s67 = sphi 0, %s67
    %s69 = sphi 0, %s67
    %s70 = sphi 0, %s69
    %s84 = sphi 0, %s70
    %s88 = sphi 0, %s88
    %s90 = sphi 0, %s88
    %s91 = sphi 0, %s90
    %s105 = sphi 0, %s91
    %s109 = sphi 0, %s109
    %s111 = sphi 0, %s109
    %s112 = sphi 0, %s111
    %s126 = sphi 0, %s112
    %s130 = sphi 0, %s130
    %s132 = sphi 0, %s130
    %s133 = sphi 0, %s132
    %s147 = sphi 0, %s133
    %s157 = sphi 0, %s159
    %s160 = sphi 0, %s157
    %s161 = sphi 0, %s160
    %s177 = sphi 0, %s161
    %s187 = sphi 0, %s189
    %s190 = sphi 0, %s187
    %s191 = sphi 0, %s190
    %s207 = sphi 0, %s191
    %s217 = sphi 0, %s219
    %s220 = sphi 0, %s217
    %s221 = sphi 0, %s220
    %s237 = sphi 0, %s221
    %s243 = sphi 0, %s245
    %s246 = sphi 0, %s243
    %s247 = sphi 0, %s246
    %s263 = sphi 0, %s247
  $region4: #{dipoles_forward.1} parent=0 // loop_header_branch
    %20 = sbr.rel (%p18) target = $region8
  $region5: #{dipoles_forward.1} parent=0 // loop_body
    %s22 = ssub.s32 %s17, 1
    %s23 = ssub.s32 %s17, 2
    %s30 = sadd.s32 1, %s25
    %p31 = scmp.ge.s32.totalorder %s30, 2
    %s32 = scalar_select %p31, 0, %s30
    %s33 = sadd.s32 1, %s24
    %s34 = scalar_select %p31, %s33, %s24
    %p35 = scmp.ge.s32.totalorder %s34, 2
    %s36 = scalar_select %p35, 0, %s34
    %s37 = smul.u32 %s24, 2
    %s38 = sadd.s32 %s37, %s25
    %s39 = smul.u32 %s36, 2
    %s40 = sadd.s32 %s39, %s32
    %s41 = ssub.s32 %s38, %s40
    %p42 = scmp.eq.s32.totalorder %s41, 0
    %s44 = sadd.s32 %s43, 1
    %s45 = scalar_select %p42, %s43, %s44
    %p48 = pneg %p42
    %p49 = scmp.eq.s32.totalorder %s17, 3
    %p50 = por %p48, %p49
    %p51 = scmp.ne.s32.totalorder %s43, %s46
    %p52 = scmp.eq.s32.totalorder %s17, 0
    %p53 = por %p51, %p52
    %p54 = scmp.ne.s32.totalorder %s43, %s46
    %p55 = scmp.eq.s32.totalorder %s22, 3
    %p56 = por %p54, %p55
    %p57 = scmp.ne.s32.totalorder %s46, %s47
    %p58 = scmp.eq.s32.totalorder %s22, 0
    %p59 = por %p57, %p58
    %p60 = scmp.ne.s32.totalorder %s46, %s47
    %p61 = scmp.eq.s32.totalorder %s23, 3
    %p62 = por %p60, %p61
    %p64 = scmp.ne.s32.totalorder %s47, %s63
    %p65 = scmp.eq.s32.totalorder %s23, 0
    %p66 = por %p64, %p65
    %s68 = sadd.s32 %s67, 1
    %p71 = scmp.eq.s32.totalorder %s17, 3
    %p72 = scmp.ne.s32.totalorder %s67, %s69
    %p73 = scmp.eq.s32.totalorder %s17, 0
    %p74 = por %p72, %p73
    %p75 = scmp.ne.s32.totalorder %s67, %s69
    %p76 = scmp.eq.s32.totalorder %s22, 3
    %p77 = por %p75, %p76
    %p78 = scmp.ne.s32.totalorder %s69, %s70
    %p79 = scmp.eq.s32.totalorder %s22, 0
    %p80 = por %p78, %p79
    %p81 = scmp.ne.s32.totalorder %s69, %s70
    %p82 = scmp.eq.s32.totalorder %s23, 3
    %p83 = por %p81, %p82
    %p85 = scmp.ne.s32.totalorder %s70, %s84
    %p86 = scmp.eq.s32.totalorder %s23, 0
    %p87 = por %p85, %p86
    %s89 = sadd.s32 %s88, 1
    %p92 = scmp.eq.s32.totalorder %s17, 3
    %p93 = scmp.ne.s32.totalorder %s88, %s90
    %p94 = scmp.eq.s32.totalorder %s17, 0
    %p95 = por %p93, %p94
    %p96 = scmp.ne.s32.totalorder %s88, %s90
    %p97 = scmp.eq.s32.totalorder %s22, 3
    %p98 = por %p96, %p97
    %p99 = scmp.ne.s32.totalorder %s90, %s91
    %p100 = scmp.eq.s32.totalorder %s22, 0
    %p101 = por %p99, %p100
    %p102 = scmp.ne.s32.totalorder %s90, %s91
    %p103 = scmp.eq.s32.totalorder %s23, 3
    %p104 = por %p102, %p103
    %p106 = scmp.ne.s32.totalorder %s91, %s105
    %p107 = scmp.eq.s32.totalorder %s23, 0
    %p108 = por %p106, %p107
    %s110 = sadd.s32 %s109, 1
    %p113 = scmp.eq.s32.totalorder %s17, 3
    %p114 = scmp.ne.s32.totalorder %s109, %s111
    %p115 = scmp.eq.s32.totalorder %s17, 0
    %p116 = por %p114, %p115
    %p117 = scmp.ne.s32.totalorder %s109, %s111
    %p118 = scmp.eq.s32.totalorder %s22, 3
    %p119 = por %p117, %p118
    %p120 = scmp.ne.s32.totalorder %s111, %s112
    %p121 = scmp.eq.s32.totalorder %s22, 0
    %p122 = por %p120, %p121
    %p123 = scmp.ne.s32.totalorder %s111, %s112
    %p124 = scmp.eq.s32.totalorder %s23, 3
    %p125 = por %p123, %p124
    %p127 = scmp.ne.s32.totalorder %s112, %s126
    %p128 = scmp.eq.s32.totalorder %s23, 0
    %p129 = por %p127, %p128
    %s131 = sadd.s32 %s130, 1
    %p134 = scmp.eq.s32.totalorder %s17, 3
    %p135 = scmp.ne.s32.totalorder %s130, %s132
    %p136 = scmp.eq.s32.totalorder %s17, 0
    %p137 = por %p135, %p136
    %p138 = scmp.ne.s32.totalorder %s130, %s132
    %p139 = scmp.eq.s32.totalorder %s22, 3
    %p140 = por %p138, %p139
    %p141 = scmp.ne.s32.totalorder %s132, %s133
    %p142 = scmp.eq.s32.totalorder %s22, 0
    %p143 = por %p141, %p142
    %p144 = scmp.ne.s32.totalorder %s132, %s133
    %p145 = scmp.eq.s32.totalorder %s23, 3
    %p146 = por %p144, %p145
    %p148 = scmp.ne.s32.totalorder %s133, %s147
    %p149 = scmp.eq.s32.totalorder %s23, 0
    %p150 = por %p148, %p149
    %s151 = smul.u32 %s24, 2
    %s152 = sadd.s32 %s151, %s25
    %s153 = smul.u32 %s36, 2
    %s154 = sadd.s32 %s153, %s32
    %s155 = ssub.s32 %s152, %s154
    %p156 = scmp.eq.s32.totalorder %s155, 0
    %s158 = sadd.s32 %s157, 1
    %s159 = scalar_select %p156, %s157, %s158
    %p162 = pneg %p156
    %p163 = scmp.eq.s32.totalorder %s17, 3
    %p164 = por %p162, %p163
    %p165 = scmp.ne.s32.totalorder %s157, %s160
    %p166 = scmp.eq.s32.totalorder %s17, 0
    %p167 = por %p165, %p166
    %p168 = scmp.ne.s32.totalorder %s157, %s160
    %p169 = scmp.eq.s32.totalorder %s22, 3
    %p170 = por %p168, %p169
    %p171 = scmp.ne.s32.totalorder %s160, %s161
    %p172 = scmp.eq.s32.totalorder %s22, 0
    %p173 = por %p171, %p172
    %p174 = scmp.ne.s32.totalorder %s160, %s161
    %p175 = scmp.eq.s32.totalorder %s23, 3
    %p176 = por %p174, %p175
    %p178 = scmp.ne.s32.totalorder %s161, %s177
    %p179 = scmp.eq.s32.totalorder %s23, 0
    %p180 = por %p178, %p179
    %s181 = smul.u32 %s24, 2
    %s182 = sadd.s32 %s181, %s25
    %s183 = smul.u32 %s36, 2
    %s184 = sadd.s32 %s183, %s32
    %s185 = ssub.s32 %s182, %s184
    %p186 = scmp.eq.s32.totalorder %s185, 0
    %s188 = sadd.s32 %s187, 1
    %s189 = scalar_select %p186, %s187, %s188
    %p192 = pneg %p186
    %p193 = scmp.eq.s32.totalorder %s17, 3
    %p194 = por %p192, %p193
    %p195 = scmp.ne.s32.totalorder %s187, %s190
    %p196 = scmp.eq.s32.totalorder %s17, 0
    %p197 = por %p195, %p196
    %p198 = scmp.ne.s32.totalorder %s187, %s190
    %p199 = scmp.eq.s32.totalorder %s22, 3
    %p200 = por %p198, %p199
    %p201 = scmp.ne.s32.totalorder %s190, %s191
    %p202 = scmp.eq.s32.totalorder %s22, 0
    %p203 = por %p201, %p202
    %p204 = scmp.ne.s32.totalorder %s190, %s191
    %p205 = scmp.eq.s32.totalorder %s23, 3
    %p206 = por %p204, %p205
    %p208 = scmp.ne.s32.totalorder %s191, %s207
    %p209 = scmp.eq.s32.totalorder %s23, 0
    %p210 = por %p208, %p209
    %s211 = smul.u32 %s24, 2
    %s212 = sadd.s32 %s211, %s25
    %s213 = smul.u32 %s36, 2
    %s214 = sadd.s32 %s213, %s32
    %s215 = ssub.s32 %s212, %s214
    %p216 = scmp.eq.s32.totalorder %s215, 0
    %s218 = sadd.s32 %s217, 1
    %s219 = scalar_select %p216, %s217, %s218
    %p222 = pneg %p216
    %p223 = scmp.eq.s32.totalorder %s17, 3
    %p224 = por %p222, %p223
    %p225 = scmp.ne.s32.totalorder %s217, %s220
    %p226 = scmp.eq.s32.totalorder %s17, 0
    %p227 = por %p225, %p226
    %p228 = scmp.ne.s32.totalorder %s217, %s220
    %p229 = scmp.eq.s32.totalorder %s22, 3
    %p230 = por %p228, %p229
    %p231 = scmp.ne.s32.totalorder %s220, %s221
    %p232 = scmp.eq.s32.totalorder %s22, 0
    %p233 = por %p231, %p232
    %p234 = scmp.ne.s32.totalorder %s220, %s221
    %p235 = scmp.eq.s32.totalorder %s23, 3
    %p236 = por %p234, %p235
    %p238 = scmp.ne.s32.totalorder %s221, %s237
    %p239 = scmp.eq.s32.totalorder %s23, 0
    %p240 = por %p238, %p239
    %s241 = ssub.s32 %s24, %s36
    %p242 = scmp.eq.s32.totalorder %s241, 0
    %s244 = sadd.s32 %s243, 1
    %s245 = scalar_select %p242, %s243, %s244
    %p248 = pneg %p242
    %p249 = scmp.eq.s32.totalorder %s17, 3
    %p250 = por %p248, %p249
    %p251 = scmp.ne.s32.totalorder %s243, %s246
    %p252 = scmp.eq.s32.totalorder %s17, 0
    %p253 = por %p251, %p252
    %p254 = scmp.ne.s32.totalorder %s243, %s246
    %p255 = scmp.eq.s32.totalorder %s22, 3
    %p256 = por %p254, %p255
    %p257 = scmp.ne.s32.totalorder %s246, %s247
    %p258 = scmp.eq.s32.totalorder %s22, 0
    %p259 = por %p257, %p258
    %p260 = scmp.ne.s32.totalorder %s246, %s247
    %p261 = scmp.eq.s32.totalorder %s23, 3
    %p262 = por %p260, %p261
    %p264 = scmp.ne.s32.totalorder %s247, %s263
    %p265 = scmp.eq.s32.totalorder %s23, 0
    %p266 = por %p264, %p265
    %p267 = scmp.le.s32.totalorder 1, %s17
    %p268 = scmp.lt.s32.totalorder %s17, 5
    %p269 = pnand %p267, %p268
    %p270 = pneg %p269
    // Predicated region
    $region9: #{dipoles_forward.1} parent=5 // pred_check
      _
    $region10: #{dipoles_forward.1} parent=5 // pred_check_branch
      %272 = sbr.rel (%p269) target = $region12
    $region11: #{dipoles_forward.1} parent=5 // pred_region
      %s273 = ssub.s32 %s17, 1
      // Predicated region
      $region13: #{dipoles_forward.1} parent=11 // pred_check
        %p274 = pneg %p80
      $region14: #{dipoles_forward.1} parent=11 // pred_check_branch
        %276 = sbr.rel (%p274) target = $region16
      $region15: #{dipoles_forward.1} parent=11 // pred_region
        _
      $region16: #{dipoles_forward.1} parent=11 // pred_fallthru
        _
      // Predicated region
      $region17: #{dipoles_forward.1} parent=11 // pred_check
        %p277 = pneg %p101
      $region18: #{dipoles_forward.1} parent=11 // pred_check_branch
        %279 = sbr.rel (%p277) target = $region20
      $region19: #{dipoles_forward.1} parent=11 // pred_region
        _
      $region20: #{dipoles_forward.1} parent=11 // pred_fallthru
        _
      // Predicated region
      $region21: #{dipoles_forward.1} parent=11 // pred_check
        %p280 = pneg %p122
      $region22: #{dipoles_forward.1} parent=11 // pred_check_branch
        %282 = sbr.rel (%p280) target = $region24
      $region23: #{dipoles_forward.1} parent=11 // pred_region
        _
      $region24: #{dipoles_forward.1} parent=11 // pred_fallthru
        _
      // Predicated region
      $region25: #{dipoles_forward.1} parent=11 // pred_check
        %p283 = pneg %p143
      $region26: #{dipoles_forward.1} parent=11 // pred_check_branch
        %285 = sbr.rel (%p283) target = $region28
      $region27: #{dipoles_forward.1} parent=11 // pred_region
        _
      $region28: #{dipoles_forward.1} parent=11 // pred_fallthru
        _
    $region12: #{dipoles_forward.1} parent=5 // pred_fallthru
      _
    %p286 = scmp.lt.s32.totalorder %s17, 4
    // Predicated region
    $region29: #{dipoles_forward.1} parent=5 // pred_check
      %p287 = pneg %p286
    $region30: #{dipoles_forward.1} parent=5 // pred_check_branch
      %289 = sbr.rel (%p287) target = $region32
    $region31: #{dipoles_forward.1} parent=5 // pred_region
      // Predicated region
      $region33: #{dipoles_forward.1} parent=31 // pred_check
        %p290 = pneg %p53
      $region34: #{dipoles_forward.1} parent=31 // pred_check_branch
        %292 = sbr.rel (%p290) target = $region36
      $region35: #{dipoles_forward.1} parent=31 // pred_region
        %s293 = smul.u32 %s24, 2
        %s294 = sadd.s32 %s293, %s25
        %s295 = smul.u32 16, %s294
        %p296 = scmp.lt.s32.totalorder %s295, 63
        %s297 = scalar_select %p296, %s295, 63
        %s298 = smul.addr %s297, 8
        %s299 = scalar_lea.vmem %s0, %s298
        %s300 = smul.u32 %s24, 2
        %s301 = sadd.s32 %s300, %s25
        %s302 = smul.u32 16, %s301
      $region36: #{dipoles_forward.1} parent=31 // pred_fallthru
        _
      // Predicated region
      $region37: #{dipoles_forward.1} parent=31 // pred_check
        %p303 = pneg %p167
      $region38: #{dipoles_forward.1} parent=31 // pred_check_branch
        %305 = sbr.rel (%p303) target = $region40
      $region39: #{dipoles_forward.1} parent=31 // pred_region
        %s306 = smul.u32 %s24, 2
        %s307 = sadd.s32 %s306, %s25
        %p308 = scmp.lt.s32.totalorder %s307, 3
        %s309 = scalar_select %p308, %s307, 3
        %s310 = smul.addr %s309, 4
        %s311 = scalar_lea.vmem %s5, %s310
        %s312 = smul.u32 %s24, 2
        %s313 = sadd.s32 %s312, %s25
      $region40: #{dipoles_forward.1} parent=31 // pred_fallthru
        _
      // Predicated region
      $region41: #{dipoles_forward.1} parent=31 // pred_check
        %p314 = pneg %p197
      $region42: #{dipoles_forward.1} parent=31 // pred_check_branch
        %316 = sbr.rel (%p314) target = $region44
      $region43: #{dipoles_forward.1} parent=31 // pred_region
        %s317 = smul.u32 %s24, 2
        %s318 = sadd.s32 %s317, %s25
        %s319 = smul.u32 16, %s318
        %p320 = scmp.lt.s32.totalorder %s319, 63
        %s321 = scalar_select %p320, %s319, 63
        %s322 = smul.addr %s321, 4
        %s323 = scalar_lea.vmem %s6, %s322
        %s324 = smul.u32 %s24, 2
        %s325 = sadd.s32 %s324, %s25
        %s326 = smul.u32 16, %s325
      $region44: #{dipoles_forward.1} parent=31 // pred_fallthru
        _
    $region32: #{dipoles_forward.1} parent=5 // pred_fallthru
      _
    %p327 = scmp.le.s32.totalorder 1, %s17
    %p328 = scmp.lt.s32.totalorder %s17, 5
    %p329 = pnand %p327, %p328
    %p330 = pneg %p329
    // Predicated region
    $region45: #{dipoles_forward.1} parent=5 // pred_check
      _
    $region46: #{dipoles_forward.1} parent=5 // pred_check_branch
      %332 = sbr.rel (%p329) target = $region48
    $region47: #{dipoles_forward.1} parent=5 // pred_region
      %s333 = ssub.s32 %s17, 1
      %s334 = smul.u32 %s26, 2
      %s335 = sadd.s32 %s334, %s27
      %s336 = smul.u32 16, %s335
      %p337 = scmp.lt.s32.totalorder %s336, 63
      %s338 = scalar_select %p337, %s336, 63
      %s339 = smul.addr %s338, 8
      %s340 = scalar_lea.vmem %s0, %s339
      %p341 = pneg %p59
      %p342 = pneg %p56
      %p343 = pneg %p80
      %p344 = pneg %p77
      %p345 = pneg %p101
      %p346 = pneg %p98
      %p347 = pneg %p122
      %p348 = pneg %p119
      %p349 = pneg %p143
      %p350 = pneg %p140
      %s351 = smul.u32 %s26, 2
      %s352 = sadd.s32 %s351, %s27
      %p353 = scmp.lt.s32.totalorder %s352, 3
      %s354 = scalar_select %p353, %s352, 3
      %s355 = smul.addr %s354, 4
      %s356 = scalar_lea.vmem %s5, %s355
      %p357 = pneg %p173
      %p358 = pneg %p170
      %s359 = smul.u32 %s26, 2
      %s360 = sadd.s32 %s359, %s27
      %s361 = smul.u32 16, %s360
      %p362 = scmp.lt.s32.totalorder %s361, 63
      %s363 = scalar_select %p362, %s361, 63
      %s364 = smul.addr %s363, 4
      %s365 = scalar_lea.vmem %s6, %s364
      %p366 = pneg %p203
      %p367 = pneg %p200
      %p368 = pneg %p233
      %p369 = pneg %p230
      %s370 = smul.u32 %s26, 2
      %s371 = sadd.s32 %s370, %s27
      %p372 = scmp.lt.s32.totalorder %s371, 3
      %s373 = scalar_select %p372, %s371, 3
      %s374 = scalar_lea.vmem %s7, %s373
      %p375 = pneg %p259
      %p376 = pneg %p256
      %p377 = scmp.lt.s32.totalorder %s26, 1
      %s378 = scalar_select %p377, %s26, 1
      %s379 = smul.addr %s378, 8
      %s380 = scalar_lea.vmem %s8, %s379
      %s381 = smul.u32 %s26, 2
      %s382 = sadd.s32 %s381, %s27
      %s383 = smul.u32 16, %s382
      %p384 = scmp.lt.s32.totalorder %s383, 63
      %s385 = scalar_select %p384, %s383, 63
      %s386 = smul.addr %s385, 8
      %s387 = scalar_lea.vmem %s0, %s386
      %s388 = smul.u32 %s26, 2
      %s389 = sadd.s32 %s388, %s27
      %s390 = smul.u32 16, %s389
      %s391 = smul.u32 %s26, 2
      %s392 = sadd.s32 %s391, %s27
      %p393 = scmp.lt.s32.totalorder %s392, 3
      %s394 = scalar_select %p393, %s392, 3
      %s395 = smul.addr %s394, 4
      %s396 = scalar_lea.vmem %s5, %s395
      %s397 = smul.u32 %s26, 2
      %s398 = sadd.s32 %s397, %s27
      %s399 = smul.u32 %s26, 2
      %s400 = sadd.s32 %s399, %s27
      %s401 = smul.u32 16, %s400
      %p402 = scmp.lt.s32.totalorder %s401, 63
      %s403 = scalar_select %p402, %s401, 63
      %s404 = smul.addr %s403, 4
      %s405 = scalar_lea.vmem %s6, %s404
      %s406 = smul.u32 %s26, 2
      %s407 = sadd.s32 %s406, %s27
      %s408 = smul.u32 16, %s407
      %s409 = smul.u32 %s26, 2
      %s410 = sadd.s32 %s409, %s27
      %p411 = scmp.lt.s32.totalorder %s410, 3
      %s412 = scalar_select %p411, %s410, 3
      %s413 = scalar_lea.vmem %s7, %s412
      %s414 = smul.u32 %s26, 2
      %s415 = sadd.s32 %s414, %s27
      %p416 = scmp.lt.s32.totalorder %s26, 1
      %s417 = scalar_select %p416, %s26, 1
      %s418 = smul.addr %s417, 8
      %s419 = scalar_lea.vmem %s8, %s418
      %p420 = scmp.eq.s32.totalorder %s27, 0
      // Predicated region
      $region49: #{dipoles_forward.1} parent=47 // pred_check
        %p421 = pneg %p420
      $region50: #{dipoles_forward.1} parent=47 // pred_check_branch
        %423 = sbr.rel (%p421) target = $region52
      $region51: #{dipoles_forward.1} parent=47 // pred_region
        %vm424 = vcmask 22528
        %425 = vst.msk [vmem:[%s419] sm:$0x7f] %vm424, 0.0
      $region52: #{dipoles_forward.1} parent=47 // pred_fallthru
        _
      %v426 = vld [vmem:[%s387] sm:$0xff]
      %v427 = vld [vmem:[%s387 + $0x8] sm:$0xff]
      %v428 = vld [vmem:[%s387 + $0x10] sm:$0xff]
      %v429 = vld [vmem:[%s387 + $0x18] sm:$0xff]
      %v430 = vld [vmem:[%s387 + $0x20] sm:$0xff]
      %v431 = vld [vmem:[%s387 + $0x28] sm:$0xff]
      %v432 = vld [vmem:[%s387 + $0x30] sm:$0xff]
      %v433 = vld [vmem:[%s387 + $0x38] sm:$0xff]
      %v434 = vld [vmem:[%s387 + $0x40] sm:$0xff]
      %v435 = vld [vmem:[%s387 + $0x48] sm:$0xff]
      %v436 = vld [vmem:[%s387 + $0x50] sm:$0xff]
      %v437 = vld [vmem:[%s387 + $0x58] sm:$0xff]
      %v438 = vld [vmem:[%s387 + $0x60] sm:$0xff]
      %v439 = vld [vmem:[%s387 + $0x68] sm:$0xff]
      %v440 = vld [vmem:[%s387 + $0x70] sm:$0xff]
      %v441 = vld [vmem:[%s387 + $0x78] sm:$0xff]
      %v442 = vld [vmem:[%s1] sm:$0xff]
      %v443 = vld [vmem:[%s1 + $0x8] sm:$0xff]
      %v444 = vld [vmem:[%s1 + $0x10] sm:$0xff]
      %v445 = vld [vmem:[%s1 + $0x18] sm:$0xff]
      %v446 = vld [vmem:[%s2] sm:$0x1]
      %v448 = vlaneseq
      %v449 = vshrl.u32 %v448, 7
      %v450 = vsub.s32 0, %v449
      %v451 = vrot.slane %v446, %v450
      %vm453 = vcmask 261120
      %v455 = vsel %vm453, %v426, 0
      %v458 = vsel %vm453, %v427, 0
      %v461 = vsel %vm453, %v428, 0
      %v464 = vsel %vm453, %v429, 0
      %v467 = vsel %vm453, %v430, 0
      %v470 = vsel %vm453, %v431, 0
      %v473 = vsel %vm453, %v432, 0
      %v476 = vsel %vm453, %v433, 0
      %v479 = vsel %vm453, %v434, 0
      %v482 = vsel %vm453, %v435, 0
      %v485 = vsel %vm453, %v436, 0
      %v488 = vsel %vm453, %v437, 0
      %v491 = vsel %vm453, %v438, 0
      %v494 = vsel %vm453, %v439, 0
      %v497 = vsel %vm453, %v440, 0
      %v500 = vsel %vm453, %v441, 0
      %502 = vmatprep.subr.mxu0 0.0
      %503 = vmatpush1.msra.mxu0 %v442
      %504 = vmatprep.subr.mxu0 0.0
      %505 = vmatpush1.msra.mxu0 %v443
      %506 = vmatprep.subr.mxu0 0.0
      %507 = vmatpush1.msra.mxu0 %v444
      %508 = vmatprep.subr.mxu0 0.0
      %509 = vmatpush1.msra.mxu0 %v445
      %510 = vmatprep.subr.mxu0 0.0
      %511 = vmatpush1.msra.mxu0 0.0
      %512 = vmatprep.subr.mxu0 0.0
      %513 = vmatpush1.msra.mxu0 0.0
      %514 = vmatprep.subr.mxu0 0.0
      %515 = vmatpush1.msra.mxu0 0.0
      %516 = vmatprep.subr.mxu0 0.0
      %517 = vmatpush1.msra.mxu0 0.0
      %518 = vmatprep.subr.mxu0 0.0
      %519 = vmatpush1.msra.mxu0 0.0
      %520 = vmatprep.subr.mxu0 0.0
      %521 = vmatpush1.msra.mxu0 0.0
      %522 = vmatprep.subr.mxu0 0.0
      %523 = vmatpush1.msra.mxu0 0.0
      %524 = vmatprep.subr.mxu0 0.0
      %525 = vmatpush1.msra.mxu0 0.0
      %526 = vmatprep.subr.mxu0 0.0
      %527 = vmatpush1.msra.mxu0 0.0
      %528 = vmatprep.subr.mxu0 0.0
      %529 = vmatpush1.msra.mxu0 0.0
      %530 = vmatprep.subr.mxu0 0.0
      %531 = vmatpush1.msra.mxu0 0.0
      %532 = vmatprep.subr.mxu0 0.0
      %533 = vmatpush1.msra.mxu0 0.0
      %534 = vmatprep.subr.mxu0 0.0
      %535 = vmatpush1.msra.mxu0 0.0
      %536 = vmatprep.subr.mxu0 0.0
      %537 = vmatpush1.msra.mxu0 0.0
      %538 = vmatprep.subr.mxu0 0.0
      %539 = vmatpush1.msra.mxu0 0.0
      %540 = vmatprep.subr.mxu0 0.0
      %541 = vmatpush1.msra.mxu0 0.0
      %542 = vmatprep.subr.mxu0 0.0
      %543 = vmatpush1.msra.mxu0 0.0
      %544 = vmatprep.subr.mxu0 0.0
      %545 = vmatpush1.msra.mxu0 0.0
      %546 = vmatprep.subr.mxu0 0.0
      %547 = vmatpush1.msra.mxu0 0.0
      %548 = vmatprep.subr.mxu0 0.0
      %549 = vmatpush1.msra.mxu0 0.0
      %550 = vmatprep.subr.mxu0 0.0
      %551 = vmatpush1.msra.mxu0 0.0
      %552 = vmatprep.subr.mxu0 0.0
      %553 = vmatpush1.msra.mxu0 0.0
      %554 = vmatprep.subr.mxu0 0.0
      %555 = vmatpush1.msra.mxu0 0.0
      %556 = vmatprep.subr.mxu0 0.0
      %557 = vmatpush1.msra.mxu0 0.0
      %558 = vmatprep.subr.mxu0 0.0
      %559 = vmatpush1.msra.mxu0 0.0
      %560 = vmatprep.subr.mxu0 0.0
      %561 = vmatpush1.msra.mxu0 0.0
      %562 = vmatprep.subr.mxu0 0.0
      %563 = vmatpush1.msra.mxu0 0.0
      %564 = vmatprep.subr.mxu0 0.0
      %565 = vmatpush1.msra.mxu0 0.0
      %566 = vmatprep.mubr.f32.mxu0 0.0
      %567 = vmatmul.mubr.f32.gmra.mrb[0].mxu0 %v455
      %v568 = vpop.f32.mrb[0].mxu0
      %v569 = vadd.f32 %v451, %v568
      %v570 = vpop.f32.mrb[0].mxu0
      %571 = vmatprep.mubr.f32.mxu0 0.0
      %572 = vmatmul.mubr.f32.gmra.mrb[0].mxu0 %v458
      %v573 = vpop.f32.mrb[0].mxu0
      %v574 = vadd.f32 %v451, %v573
      %v575 = vpop.f32.mrb[0].mxu0
      %576 = vmatprep.mubr.f32.mxu0 0.0
      %577 = vmatmul.mubr.f32.gmra.mrb[0].mxu0 %v461
      %v578 = vpop.f32.mrb[0].mxu0
      %v579 = vadd.f32 %v451, %v578
      %v580 = vpop.f32.mrb[0].mxu0
      %581 = vmatprep.mubr.f32.mxu0 0.0
      %582 = vmatmul.mubr.f32.gmra.mrb[0].mxu0 %v464
      %v583 = vpop.f32.mrb[0].mxu0
      %v584 = vadd.f32 %v451, %v583
      %v585 = vpop.f32.mrb[0].mxu0
      %586 = vmatprep.mubr.f32.mxu0 0.0
      %587 = vmatmul.mubr.f32.gmra.mrb[0].mxu0 %v467
      %v588 = vpop.f32.mrb[0].mxu0
      %v589 = vadd.f32 %v451, %v588
      %v590 = vpop.f32.mrb[0].mxu0
      %591 = vmatprep.mubr.f32.mxu0 0.0
      %592 = vmatmul.mubr.f32.gmra.mrb[0].mxu0 %v470
      %v593 = vpop.f32.mrb[0].mxu0
      %v594 = vadd.f32 %v451, %v593
      %v595 = vpop.f32.mrb[0].mxu0
      %596 = vmatprep.mubr.f32.mxu0 0.0
      %597 = vmatmul.mubr.f32.gmra.mrb[0].mxu0 %v473
      %v598 = vpop.f32.mrb[0].mxu0
      %v599 = vadd.f32 %v451, %v598
      %v600 = vpop.f32.mrb[0].mxu0
      %601 = vmatprep.mubr.f32.mxu0 0.0
      %602 = vmatmul.mubr.f32.gmra.mrb[0].mxu0 %v476
      %v603 = vpop.f32.mrb[0].mxu0
      %v604 = vadd.f32 %v451, %v603
      %v605 = vpop.f32.mrb[0].mxu0
      %606 = vmatprep.mubr.f32.mxu0 0.0
      %607 = vmatmul.mubr.f32.gmra.mrb[0].mxu0 %v479
      %v608 = vpop.f32.mrb[0].mxu0
      %v609 = vadd.f32 %v451, %v608
      %v610 = vpop.f32.mrb[0].mxu0
      %611 = vmatprep.mubr.f32.mxu0 0.0
      %612 = vmatmul.mubr.f32.gmra.mrb[0].mxu0 %v482
      %v613 = vpop.f32.mrb[0].mxu0
      %v614 = vadd.f32 %v451, %v613
      %v615 = vpop.f32.mrb[0].mxu0
      %616 = vmatprep.mubr.f32.mxu0 0.0
      %617 = vmatmul.mubr.f32.gmra.mrb[0].mxu0 %v485
      %v618 = vpop.f32.mrb[0].mxu0
      %v619 = vadd.f32 %v451, %v618
      %v620 = vpop.f32.mrb[0].mxu0
      %621 = vmatprep.mubr.f32.mxu0 0.0
      %622 = vmatmul.mubr.f32.gmra.mrb[0].mxu0 %v488
      %v623 = vpop.f32.mrb[0].mxu0
      %v624 = vadd.f32 %v451, %v623
      %v625 = vpop.f32.mrb[0].mxu0
      %626 = vmatprep.mubr.f32.mxu0 0.0
      %627 = vmatmul.mubr.f32.gmra.mrb[0].mxu0 %v491
      %v628 = vpop.f32.mrb[0].mxu0
      %v629 = vadd.f32 %v451, %v628
      %v630 = vpop.f32.mrb[0].mxu0
      %631 = vmatprep.mubr.f32.mxu0 0.0
      %632 = vmatmul.mubr.f32.gmra.mrb[0].mxu0 %v494
      %v633 = vpop.f32.mrb[0].mxu0
      %v634 = vadd.f32 %v451, %v633
      %v635 = vpop.f32.mrb[0].mxu0
      %636 = vmatprep.mubr.f32.mxu0 0.0
      %637 = vmatmul.mubr.f32.gmra.mrb[0].mxu0 %v497
      %v638 = vpop.f32.mrb[0].mxu0
      %v639 = vadd.f32 %v451, %v638
      %v640 = vpop.f32.mrb[0].mxu0
      %641 = vmatprep.mubr.f32.mxu0 0.0
      %642 = vmatmul.mubr.f32.gmra.mrb[0].mxu0 %v500
      %v643 = vpop.f32.mrb[0].mxu0
      %v644 = vadd.f32 %v451, %v643
      %v645 = vpop.f32.mrb[0].mxu0
      %646 = vdwg.mxu0
      %v647 = vxor.u32 %v569, 2147483648
      %v648 = vxor.u32 %v574, 2147483648
      %v649 = vxor.u32 %v579, 2147483648
      %v650 = vxor.u32 %v584, 2147483648
      %v651 = vxor.u32 %v589, 2147483648
      %v652 = vxor.u32 %v594, 2147483648
      %v653 = vxor.u32 %v599, 2147483648
      %v654 = vxor.u32 %v604, 2147483648
      %v655 = vxor.u32 %v609, 2147483648
      %v656 = vxor.u32 %v614, 2147483648
      %v657 = vxor.u32 %v619, 2147483648
      %v658 = vxor.u32 %v624, 2147483648
      %v659 = vxor.u32 %v629, 2147483648
      %v660 = vxor.u32 %v634, 2147483648
      %v661 = vxor.u32 %v639, 2147483648
      %v662 = vxor.u32 %v644, 2147483648
      %v663 = vmul.f32 %v647, 1.442695
      %v664 = vpow.pop %v663
      %v665 = vmul.f32 %v648, 1.442695
      %v666 = vpow.pop %v665
      %v667 = vmul.f32 %v649, 1.442695
      %v668 = vpow.pop %v667
      %v669 = vmul.f32 %v650, 1.442695
      %v670 = vpow.pop %v669
      %v671 = vmul.f32 %v651, 1.442695
      %v672 = vpow.pop %v671
      %v673 = vmul.f32 %v652, 1.442695
      %v674 = vpow.pop %v673
      %v675 = vmul.f32 %v653, 1.442695
      %v676 = vpow.pop %v675
      %v677 = vmul.f32 %v654, 1.442695
      %v678 = vpow.pop %v677
      %v679 = vmul.f32 %v655, 1.442695
      %v680 = vpow.pop %v679
      %v681 = vmul.f32 %v656, 1.442695
      %v682 = vpow.pop %v681
      %v683 = vmul.f32 %v657, 1.442695
      %v684 = vpow.pop %v683
      %v685 = vmul.f32 %v658, 1.442695
      %v686 = vpow.pop %v685
      %v687 = vmul.f32 %v659, 1.442695
      %v688 = vpow.pop %v687
      %v689 = vmul.f32 %v660, 1.442695
      %v690 = vpow.pop %v689
      %v691 = vmul.f32 %v661, 1.442695
      %v692 = vpow.pop %v691
      %v693 = vmul.f32 %v662, 1.442695
      %v694 = vpow.pop %v693
      %v695 = vadd.f32 %v664, 1.0
      %v696 = vadd.f32 %v666, 1.0
      %v697 = vadd.f32 %v668, 1.0
      %v698 = vadd.f32 %v670, 1.0
      %v699 = vadd.f32 %v672, 1.0
      %v700 = vadd.f32 %v674, 1.0
      %v701 = vadd.f32 %v676, 1.0
      %v702 = vadd.f32 %v678, 1.0
      %v703 = vadd.f32 %v680, 1.0
      %v704 = vadd.f32 %v682, 1.0
      %v705 = vadd.f32 %v684, 1.0
      %v706 = vadd.f32 %v686, 1.0
      %v707 = vadd.f32 %v688, 1.0
      %v708 = vadd.f32 %v690, 1.0
      %v709 = vadd.f32 %v692, 1.0
      %v710 = vadd.f32 %v694, 1.0
      %v711 = vrcp.pop %v695
      %v712 = vmul.f32 1.0, %v711
      %v713 = vrcp.pop %v696
      %v714 = vmul.f32 1.0, %v713
      %v715 = vrcp.pop %v697
      %v716 = vmul.f32 1.0, %v715
      %v717 = vrcp.pop %v698
      %v718 = vmul.f32 1.0, %v717
      %v719 = vrcp.pop %v699
      %v720 = vmul.f32 1.0, %v719
      %v721 = vrcp.pop %v700
      %v722 = vmul.f32 1.0, %v721
      %v723 = vrcp.pop %v701
      %v724 = vmul.f32 1.0, %v723
      %v725 = vrcp.pop %v702
      %v726 = vmul.f32 1.0, %v725
      %v727 = vrcp.pop %v703
      %v728 = vmul.f32 1.0, %v727
      %v729 = vrcp.pop %v704
      %v730 = vmul.f32 1.0, %v729
      %v731 = vrcp.pop %v705
      %v732 = vmul.f32 1.0, %v731
      %v733 = vrcp.pop %v706
      %v734 = vmul.f32 1.0, %v733
      %v735 = vrcp.pop %v707
      %v736 = vmul.f32 1.0, %v735
      %v737 = vrcp.pop %v708
      %v738 = vmul.f32 1.0, %v737
      %v739 = vrcp.pop %v709
      %v740 = vmul.f32 1.0, %v739
      %v741 = vrcp.pop %v710
      %v742 = vmul.f32 1.0, %v741
      %v743 = vmul.f32 %v569, %v712
      %v744 = vmul.f32 %v574, %v714
      %v745 = vmul.f32 %v579, %v716
      %v746 = vmul.f32 %v584, %v718
      %v747 = vmul.f32 %v589, %v720
      %v748 = vmul.f32 %v594, %v722
      %v749 = vmul.f32 %v599, %v724
      %v750 = vmul.f32 %v604, %v726
      %v751 = vmul.f32 %v609, %v728
      %v752 = vmul.f32 %v614, %v730
      %v753 = vmul.f32 %v619, %v732
      %v754 = vmul.f32 %v624, %v734
      %v755 = vmul.f32 %v629, %v736
      %v756 = vmul.f32 %v634, %v738
      %v757 = vmul.f32 %v639, %v740
      %v758 = vmul.f32 %v644, %v742
      %v759 = vld [vmem:[%s3] sm:$0x1]
      %v760 = vld [vmem:[#allocation2] sm:$0x1]
      %762 = vset.pattern.permute.xlu0 0
      %763 = vperm.xlu0 %762, %v760
      %v764 = vpop.permute.xlu0 %763
      %v766 = vlaneseq
      %v767 = vshrl.u32 %v766, 7
      %v768 = vsub.s32 0, %v767
      %v769 = vrot.slane %v764, %v768
      %v771 = vsel %vm453, %v759, 0
      %v774 = vsel %vm453, %v743, 0
      %v777 = vsel %vm453, %v744, 0
      %v780 = vsel %vm453, %v745, 0
      %v783 = vsel %vm453, %v746, 0
      %v786 = vsel %vm453, %v747, 0
      %v789 = vsel %vm453, %v748, 0
      %v792 = vsel %vm453, %v749, 0
      %v795 = vsel %vm453, %v750, 0
      %v798 = vsel %vm453, %v751, 0
      %v801 = vsel %vm453, %v752, 0
      %v804 = vsel %vm453, %v753, 0
      %v807 = vsel %vm453, %v754, 0
      %v810 = vsel %vm453, %v755, 0
      %v813 = vsel %vm453, %v756, 0
      %v816 = vsel %vm453, %v757, 0
      %v819 = vsel %vm453, %v758, 0
      %821 = vmatprep.subr.mxu0 0.0
      %822 = vmatpush1.xpose.msra.mxu0 %v774
      %823 = vmatprep.subr.mxu0 0.0
      %824 = vmatpush1.xpose.msra.mxu0 %v777
      %825 = vmatprep.subr.mxu0 0.0
      %826 = vmatpush1.xpose.msra.mxu0 %v780
      %827 = vmatprep.subr.mxu0 0.0
      %828 = vmatpush1.xpose.msra.mxu0 %v783
      %829 = vmatprep.subr.mxu0 0.0
      %830 = vmatpush1.xpose.msra.mxu0 %v786
      %831 = vmatprep.subr.mxu0 0.0
      %832 = vmatpush1.xpose.msra.mxu0 %v789
      %833 = vmatprep.subr.mxu0 0.0
      %834 = vmatpush1.xpose.msra.mxu0 %v792
      %835 = vmatprep.subr.mxu0 0.0
      %836 = vmatpush1.xpose.msra.mxu0 %v795
      %837 = vmatprep.subr.mxu0 0.0
      %838 = vmatpush1.xpose.msra.mxu0 %v798
      %839 = vmatprep.subr.mxu0 0.0
      %840 = vmatpush1.xpose.msra.mxu0 %v801
      %841 = vmatprep.subr.mxu0 0.0
      %842 = vmatpush1.xpose.msra.mxu0 %v804
      %843 = vmatprep.subr.mxu0 0.0
      %844 = vmatpush1.xpose.msra.mxu0 %v807
      %845 = vmatprep.subr.mxu0 0.0
      %846 = vmatpush1.xpose.msra.mxu0 %v810
      %847 = vmatprep.subr.mxu0 0.0
      %848 = vmatpush1.xpose.msra.mxu0 %v813
      %849 = vmatprep.subr.mxu0 0.0
      %850 = vmatpush1.xpose.msra.mxu0 %v816
      %851 = vmatprep.subr.mxu0 0.0
      %852 = vmatpush1.xpose.msra.mxu0 %v819
      %853 = vmatprep.subr.mxu0 0.0
      %854 = vmatpush1.xpose.msra.mxu0 0.0
      %855 = vmatprep.subr.mxu0 0.0
      %856 = vmatpush1.xpose.msra.mxu0 0.0
      %857 = vmatprep.subr.mxu0 0.0
      %858 = vmatpush1.xpose.msra.mxu0 0.0
      %859 = vmatprep.subr.mxu0 0.0
      %860 = vmatpush1.xpose.msra.mxu0 0.0
      %861 = vmatprep.subr.mxu0 0.0
      %862 = vmatpush1.xpose.msra.mxu0 0.0
      %863 = vmatprep.subr.mxu0 0.0
      %864 = vmatpush1.xpose.msra.mxu0 0.0
      %865 = vmatprep.subr.mxu0 0.0
      %866 = vmatpush1.xpose.msra.mxu0 0.0
      %867 = vmatprep.subr.mxu0 0.0
      %868 = vmatpush1.xpose.msra.mxu0 0.0
      %869 = vmatprep.subr.mxu0 0.0
      %870 = vmatpush1.xpose.msra.mxu0 0.0
      %871 = vmatprep.subr.mxu0 0.0
      %872 = vmatpush1.xpose.msra.mxu0 0.0
      %873 = vmatprep.subr.mxu0 0.0
      %874 = vmatpush1.xpose.msra.mxu0 0.0
      %875 = vmatprep.subr.mxu0 0.0
      %876 = vmatpush1.xpose.msra.mxu0 0.0
      %877 = vmatprep.subr.mxu0 0.0
      %878 = vmatpush1.xpose.msra.mxu0 0.0
      %879 = vmatprep.subr.mxu0 0.0
      %880 = vmatpush1.xpose.msra.mxu0 0.0
      %881 = vmatprep.subr.mxu0 0.0
      %882 = vmatpush1.xpose.msra.mxu0 0.0
      %883 = vmatprep.subr.mxu0 0.0
      %884 = vmatpush1.xpose.msra.mxu0 0.0
      %885 = vmatprep.mubr.f32.mxu0 0.0
      %886 = vmatmul.mubr.f32.gmra.mrb[0].mxu0 %v771
      %v887 = vpop.f32.mrb[0].mxu0
      %v888 = vadd.f32 %v769, %v887
      %v889 = vpop.f32.mrb[0].mxu0
      %890 = vdwg.mxu0
      %891 = vst [vmem:[%s413] sm:$0x1] %v888
      %v892 = vld [vmem:[%s396] sm:$0x7]
      %v893 = vlaneseq
      %v894 = vshrl.u32 %v893, 7
      %v895 = vsub.s32 0, %v894
      %v896 = vrot.slane %v888, %v895
      %v897 = vmul.f32 %v896, %v892
      %v899 = vrot.slane %v897, 7
      %v902 = vrot.slane %v892, 4
      %vm904 = vcmask 1040384
      %v905 = vsel %vm904, %v888, %v899
      %vm906 = vcmask 1043456
      %v907 = vsel %vm906, %v905, %v902
      %v908 = vld [vmem:[%s405] sm:$0xf]
      %v909 = vld [vmem:[%s405 + $0x4] sm:$0xf]
      %v910 = vld [vmem:[%s405 + $0x8] sm:$0xf]
      %v911 = vld [vmem:[%s405 + $0xc] sm:$0xf]
      %v912 = vld [vmem:[%s405 + $0x10] sm:$0xf]
      %v913 = vld [vmem:[%s405 + $0x14] sm:$0xf]
      %v914 = vld [vmem:[%s405 + $0x18] sm:$0xf]
      %v915 = vld [vmem:[%s405 + $0x1c] sm:$0xf]
      %v916 = vld [vmem:[%s405 + $0x20] sm:$0xf]
      %v917 = vld [vmem:[%s405 + $0x24] sm:$0xf]
      %v918 = vld [vmem:[%s405 + $0x28] sm:$0xf]
      %v919 = vld [vmem:[%s405 + $0x2c] sm:$0xf]
      %v920 = vld [vmem:[%s405 + $0x30] sm:$0xf]
      %v921 = vld [vmem:[%s405 + $0x34] sm:$0xf]
      %v922 = vld [vmem:[%s405 + $0x38] sm:$0xf]
      %v923 = vld [vmem:[%s405 + $0x3c] sm:$0xf]
      %v924 = vunpack.c.l.bf16 %v908
      %v925 = vunpack.c.l.bf16 %v909
      %v926 = vunpack.c.l.bf16 %v910
      %v927 = vunpack.c.l.bf16 %v911
      %v928 = vunpack.c.l.bf16 %v912
      %v929 = vunpack.c.l.bf16 %v913
      %v930 = vunpack.c.l.bf16 %v914
      %v931 = vunpack.c.l.bf16 %v915
      %v932 = vunpack.c.l.bf16 %v916
      %v933 = vunpack.c.l.bf16 %v917
      %v934 = vunpack.c.l.bf16 %v918
      %v935 = vunpack.c.l.bf16 %v919
      %v936 = vunpack.c.l.bf16 %v920
      %v937 = vunpack.c.l.bf16 %v921
      %v938 = vunpack.c.l.bf16 %v922
      %v939 = vunpack.c.l.bf16 %v923
      %940 = vmatprep.subr.mxu0 0.0
      %941 = vmatpush1.msra.mxu0 %v924
      %942 = vmatprep.subr.mxu0 0.0
      %943 = vmatpush1.msra.mxu0 %v925
      %944 = vmatprep.subr.mxu0 0.0
      %945 = vmatpush1.msra.mxu0 %v926
      %946 = vmatprep.subr.mxu0 0.0
      %947 = vmatpush1.msra.mxu0 %v927
      %948 = vmatprep.subr.mxu0 0.0
      %949 = vmatpush1.msra.mxu0 %v928
      %950 = vmatprep.subr.mxu0 0.0
      %951 = vmatpush1.msra.mxu0 %v929
      %952 = vmatprep.subr.mxu0 0.0
      %953 = vmatpush1.msra.mxu0 %v930
      %954 = vmatprep.subr.mxu0 0.0
      %955 = vmatpush1.msra.mxu0 %v931
      %956 = vmatprep.subr.mxu0 0.0
      %957 = vmatpush1.msra.mxu0 %v932
      %958 = vmatprep.subr.mxu0 0.0
      %959 = vmatpush1.msra.mxu0 %v933
      %960 = vmatprep.subr.mxu0 0.0
      %961 = vmatpush1.msra.mxu0 %v934
      %962 = vmatprep.subr.mxu0 0.0
      %963 = vmatpush1.msra.mxu0 %v935
      %964 = vmatprep.subr.mxu0 0.0
      %965 = vmatpush1.msra.mxu0 %v936
      %966 = vmatprep.subr.mxu0 0.0
      %967 = vmatpush1.msra.mxu0 %v937
      %968 = vmatprep.subr.mxu0 0.0
      %969 = vmatpush1.msra.mxu0 %v938
      %970 = vmatprep.subr.mxu0 0.0
      %971 = vmatpush1.msra.mxu0 %v939
      %972 = vmatprep.subr.mxu0 0.0
      %973 = vmatpush1.msra.mxu0 0.0
      %974 = vmatprep.subr.mxu0 0.0
      %975 = vmatpush1.msra.mxu0 0.0
      %976 = vmatprep.subr.mxu0 0.0
      %977 = vmatpush1.msra.mxu0 0.0
      %978 = vmatprep.subr.mxu0 0.0
      %979 = vmatpush1.msra.mxu0 0.0
      %980 = vmatprep.subr.mxu0 0.0
      %981 = vmatpush1.msra.mxu0 0.0
      %982 = vmatprep.subr.mxu0 0.0
      %983 = vmatpush1.msra.mxu0 0.0
      %984 = vmatprep.subr.mxu0 0.0
      %985 = vmatpush1.msra.mxu0 0.0
      %986 = vmatprep.subr.mxu0 0.0
      %987 = vmatpush1.msra.mxu0 0.0
      %988 = vmatprep.subr.mxu0 0.0
      %989 = vmatpush1.msra.mxu0 0.0
      %990 = vmatprep.subr.mxu0 0.0
      %991 = vmatpush1.msra.mxu0 0.0
      %992 = vmatprep.subr.mxu0 0.0
      %993 = vmatpush1.msra.mxu0 0.0
      %994 = vmatprep.subr.mxu0 0.0
      %995 = vmatpush1.msra.mxu0 0.0
      %996 = vmatprep.subr.mxu0 0.0
      %997 = vmatpush1.msra.mxu0 0.0
      %998 = vmatprep.subr.mxu0 0.0
      %999 = vmatpush1.msra.mxu0 0.0
      %1000 = vmatprep.subr.mxu0 0.0
      %1001 = vmatpush1.msra.mxu0 0.0
      %1002 = vmatprep.subr.mxu0 0.0
      %1003 = vmatpush1.msra.mxu0 0.0
      %1004 = vmatprep.mubr.f32.mxu0 0.0
      %1005 = vmatmul.mubr.f32.gmra.mrb[0].mxu0 %v907
      %v1006 = vpop.f32.mrb[0].mxu0
      %v1007 = vadd.f32 0.0, %v1006
      %v1008 = vpop.f32.mrb[0].mxu0
      %1009 = vdwg.mxu0
      %v1010 = vld [vmem:[%s419] sm:$0x7f]
      %v1011 = vadd.f32 %v1010, %v1007
      %vm1012 = vcmask 22528
      %1013 = vst.msk [vmem:[%s419] sm:$0x7f] %vm1012, %v1011
      %s1014 = smul.u32 %s26, 2
      %s1015 = sadd.s32 %s1014, %s27
      %p1016 = scmp.lt.s32.totalorder %s1015, 3
      %s1017 = scalar_select %p1016, %s1015, 3
      %s1018 = scalar_lea.vmem %s7, %s1017
      %p1019 = scmp.lt.s32.totalorder %s26, 1
      %s1020 = scalar_select %p1019, %s26, 1
      %s1021 = smul.addr %s1020, 8
      %s1022 = scalar_lea.vmem %s8, %s1021
      // Predicated region
      $region53: #{dipoles_forward.1} parent=47 // pred_check
        %p1023 = pneg %p230
      $region54: #{dipoles_forward.1} parent=47 // pred_check_branch
        %1025 = sbr.rel (%p1023) target = $region56
      $region55: #{dipoles_forward.1} parent=47 // pred_region
        %s1026 = smul.u32 %s26, 2
        %s1027 = sadd.s32 %s1026, %s27
      $region56: #{dipoles_forward.1} parent=47 // pred_fallthru
        _
      // Predicated region
      $region57: #{dipoles_forward.1} parent=47 // pred_check
        %p1028 = pneg %p256
      $region58: #{dipoles_forward.1} parent=47 // pred_check_branch
        %1030 = sbr.rel (%p1028) target = $region60
      $region59: #{dipoles_forward.1} parent=47 // pred_region
        _
      $region60: #{dipoles_forward.1} parent=47 // pred_fallthru
        _
    $region48: #{dipoles_forward.1} parent=5 // pred_fallthru
      _
    %p1031 = scmp.le.s32.totalorder 2, %s17
    // Predicated region
    $region61: #{dipoles_forward.1} parent=5 // pred_check
      %p1032 = pneg %p1031
    $region62: #{dipoles_forward.1} parent=5 // pred_check_branch
      %1034 = sbr.rel (%p1032) target = $region64
    $region63: #{dipoles_forward.1} parent=5 // pred_region
      %s1035 = ssub.s32 %s17, 2
      // Predicated region
      $region65: #{dipoles_forward.1} parent=63 // pred_check
        %p1036 = pneg %p236
      $region66: #{dipoles_forward.1} parent=63 // pred_check_branch
        %1038 = sbr.rel (%p1036) target = $region68
      $region67: #{dipoles_forward.1} parent=63 // pred_region
        %s1039 = smul.u32 %s28, 2
        %s1040 = sadd.s32 %s1039, %s29
        %p1041 = scmp.lt.s32.totalorder %s1040, 3
        %s1042 = scalar_select %p1041, %s1040, 3
        %s1043 = scalar_lea.vmem %s7, %s1042
      $region68: #{dipoles_forward.1} parent=63 // pred_fallthru
        _
      // Predicated region
      $region69: #{dipoles_forward.1} parent=63 // pred_check
        %p1044 = pneg %p262
      $region70: #{dipoles_forward.1} parent=63 // pred_check_branch
        %1046 = sbr.rel (%p1044) target = $region72
      $region71: #{dipoles_forward.1} parent=63 // pred_region
        %p1047 = scmp.lt.s32.totalorder %s28, 1
        %s1048 = scalar_select %p1047, %s28, 1
        %s1049 = smul.addr %s1048, 8
        %s1050 = scalar_lea.vmem %s8, %s1049
      $region72: #{dipoles_forward.1} parent=63 // pred_fallthru
        _
    $region64: #{dipoles_forward.1} parent=5 // pred_fallthru
      _
  $region6: #{dipoles_forward.1} parent=0 // loop_footer
    %s21 = sadd.s32 1, %s17
  $region7: #{dipoles_forward.1} parent=0 // loop_footer_branch
    %16 = sbr.rel target = $region3
  $region8: #{dipoles_forward.1} parent=0 // loop_exit
    _

</llo_original>
